<compile_context>
chip_gen: v6e
topology: v6e:2x2x1
jax: 0.10.0
libtpu: 0.0.40
codegen_flags: <defaults>
</compile_context>

<pallas_src>
import functools

import jax
import jax.numpy as jnp
from jax.experimental import pallas as pl
from jax.experimental.pallas import tpu as pltpu


HIDDEN = 30        # fixed by the module definition
LANE = 128
SUBLANE = 8
_SMALL_BATCH = 512  # gridless single-invocation path at or below this batch


def _round_up(n, m):
    return ((n + m - 1) // m) * m


def anet_kernel(x_ref, w1_ref, b1_ref, w2_ref, b2_ref, out_ref):
    # x_ref : (TB, s_dim)      VMEM f32   (s_dim unpadded: full-array-dim exemption)
    # w1_ref: (s_dim, h_pad)   VMEM f32   (hidden zero-padded 30 -> 128, once, at init)
    # b1_ref: (1, h_pad)       VMEM f32
    # w2_ref: (h_pad, a_dim)   VMEM f32   (a_dim NOT lane-padded: a masked vst is
    # b2_ref: (1, a_dim)                   cheap, 64x padded HBM writeback is not)
    # out_ref: (TB, a_dim)     VMEM f32 or bf16
    h = jnp.dot(x_ref[...], w1_ref[...], preferred_element_type=jnp.float32)
    h = jnp.maximum(h + b1_ref[...], 0.0)
    y = jnp.dot(h, w2_ref[...], preferred_element_type=jnp.float32)
    out_ref[...] = (jnp.tanh(y + b2_ref[...]) * 2.0).astype(out_ref.dtype)


def prepare_params(w1, b1, w2, b2):
    """One-time (init-time) padding of the weights to kernel layout.

    w1: (s_dim, HIDDEN), b1: (HIDDEN,), w2: (HIDDEN, a_dim), b2: (a_dim,)
    Hidden dim is zero-padded to 128 lanes (exact: relu(0)=0 and the matching
    w2 rows are zero).  s_dim and a_dim are left unpadded.
    """
    s_dim = w1.shape[0]
    a_dim = w2.shape[-1]
    h_pad = _round_up(HIDDEN, LANE)
    w1p = jnp.zeros((s_dim, h_pad), jnp.float32).at[:, :HIDDEN].set(w1)
    b1p = jnp.zeros((1, h_pad), jnp.float32).at[:, :HIDDEN].set(b1.reshape(1, -1))
    w2p = jnp.zeros((h_pad, a_dim), jnp.float32).at[:HIDDEN, :].set(w2)
    b2p = b2.reshape(1, a_dim).astype(jnp.float32)
    return w1p, b1p, w2p, b2p


@functools.partial(jax.jit, static_argnames=("block_b", "out_dtype"))
def anet_forward(x, w1p, b1p, w2p, b2p, *, block_b=1024, out_dtype=jnp.float32):
    """ANet forward: tanh(relu(x @ w1 + b1) @ w2 + b2) * 2.

    x: (B, s_dim) f32; padded params come from prepare_params().
    Returns (B, a_dim) in out_dtype.
    """
    B, s_dim = x.shape
    h_pad = w1p.shape[-1]
    a_dim = w2p.shape[-1]
    itemsize = jnp.dtype(out_dtype).itemsize
    weight_bytes = 4 * (s_dim * h_pad + h_pad + h_pad * a_dim + a_dim)

    if B <= _SMALL_BATCH:
        # Small batch (RL inference): single gridless invocation, everything
        # VMEM-resident, no pipeline prologue, no padding copies at all.
        cost = pl.CostEstimate(
            flops=2 * B * (s_dim * h_pad + h_pad * a_dim),
            transcendentals=B * a_dim,
            bytes_accessed=4 * B * s_dim + itemsize * B * a_dim + weight_bytes,
        )
        vmem = pl.BlockSpec(memory_space=pltpu.MemorySpace.VMEM)
        return pl.pallas_call(
            anet_kernel,
            out_shape=jax.ShapeDtypeStruct((B, a_dim), out_dtype),
            in_specs=[vmem] * 5,
            out_specs=vmem,
            cost_estimate=cost,
        )(x, w1p, b1p, w2p, b2p)

    # Large batch: tile the batch axis.  Cap the tile so the grid always has
    # >= 2 tiles (v7x: both TensorCores get work via the "parallel" axis).
    # Weights keep index_map (0, 0) so they stay VMEM-resident across steps.
    block = min(block_b, _round_up(pl.cdiv(B, 2), SUBLANE))
    b_pad = _round_up(B, block)
    if b_pad != B:
        # Padded rows compute tanh(b2)*2 garbage in out[B:]; they are sliced
        # off below and must never be consumed from the padded buffer.
        x = jnp.zeros((b_pad, s_dim), x.dtype).at[:B, :].set(x)
    nb = b_pad // block

    cost = pl.CostEstimate(
        flops=2 * b_pad * (s_dim * h_pad + h_pad * a_dim),
        transcendentals=b_pad * a_dim,
        bytes_accessed=4 * b_pad * s_dim + itemsize * b_pad * a_dim + weight_bytes,
    )

    out = pl.pallas_call(
        anet_kernel,
        out_shape=jax.ShapeDtypeStruct((b_pad, a_dim), out_dtype),
        grid=(nb,),
        in_specs=[
            pl.BlockSpec((block, s_dim), lambda i: (i, 0)),
            pl.BlockSpec((s_dim, h_pad), lambda i: (0, 0)),
            pl.BlockSpec((1, h_pad), lambda i: (0, 0)),
            pl.BlockSpec((h_pad, a_dim), lambda i: (0, 0)),
            pl.BlockSpec((1, a_dim), lambda i: (0, 0)),
        ],
        out_specs=pl.BlockSpec((block, a_dim), lambda i: (i, 0)),
        compiler_params=pltpu.CompilerParams(
            dimension_semantics=("parallel",),
            # Actual need is a few MiB even at block_b=4096; don't starve
            # surrounding XLA fusions (v7x has only 64 MiB VMEM per TC).
            vmem_limit_bytes=16 * 1024 * 1024,
        ),
        cost_estimate=cost,
    )(x, w1p, b1p, w2p, b2p)
    return out[:B] if b_pad != B else out


def init_params(key, s_dim, a_dim):
    """Synthetic init mirroring the PyTorch __init__:
       weights ~ N(0, 0.1); biases use the default Linear uniform init."""
    k1, k2, k3, k4 = jax.random.split(key, 4)
    # stored as (in_features, out_features) == torch weight transposed
    w1 = 0.1 * jax.random.normal(k1, (s_dim, HIDDEN), dtype=jnp.float32)
    w2 = 0.1 * jax.random.normal(k2, (HIDDEN, a_dim), dtype=jnp.float32)
    bound1 = 1.0 / jnp.sqrt(jnp.float32(s_dim))
    bound2 = 1.0 / jnp.sqrt(jnp.float32(HIDDEN))
    b1 = jax.random.uniform(k3, (HIDDEN,), jnp.float32, -bound1, bound1)
    b2 = jax.random.uniform(k4, (a_dim,), jnp.float32, -bound2, bound2)
    return w1, b1, w2, b2


def anet_reference(x, w1, b1, w2, b2):
    """Pure-JAX reference for correctness check."""
    h = jnp.maximum(x @ w1 + b1.reshape(1, -1), 0.0)
    return jnp.tanh(h @ w2 + b2.reshape(1, -1)) * 2.0


if __name__ == "__main__":
    key = jax.random.PRNGKey(0)
    k_x, k_p, k_xl = jax.random.split(key, 3)

    s_dim, a_dim = 4, 2   # small env-like dims
    w1, b1, w2, b2 = init_params(k_p, s_dim, a_dim)
    w1p, b1p, w2p, b2p = prepare_params(w1, b1, w2, b2)   # padded once, at init

    # 1) Small batch -> gridless single-block path.
    batch = 8
    x = jax.random.normal(k_x, (batch, s_dim), dtype=jnp.float32)
    out = jax.block_until_ready(anet_forward(x, w1p, b1p, w2p, b2p))
    ref = anet_reference(x, w1, b1, w2, b2)
    assert out.shape == (batch, a_dim)
    assert jnp.allclose(out, ref, atol=1e-5, rtol=1e-5), "small-batch mismatch"

    # 2) Larger batch (not a block multiple) -> batch-tiled "parallel" grid
    #    path with >= 2 tiles (feeds both v7x TensorCores).
    batch_l = 1000
    xl = jax.random.normal(k_xl, (batch_l, s_dim), dtype=jnp.float32)
    out_l = jax.block_until_ready(anet_forward(xl, w1p, b1p, w2p, b2p))
    ref_l = anet_reference(xl, w1, b1, w2, b2)
    assert out_l.shape == (batch_l, a_dim)
    assert jnp.allclose(out_l, ref_l, atol=1e-5, rtol=1e-5), "tiled mismatch"

    # 3) Same tiled path with a bf16 output (halves the remaining writeback;
    #    tanh*2 lies in [-2, 2], well within bf16 range).  Compute stays f32.
    out_bf16 = jax.block_until_ready(
        anet_forward(xl, w1p, b1p, w2p, b2p, out_dtype=jnp.bfloat16))
    assert out_bf16.dtype == jnp.bfloat16
    assert jnp.allclose(out_bf16.astype(jnp.float32), ref_l,
                        atol=2e-2, rtol=2e-2), "bf16-output mismatch"

    print("KERNEL_OK")
</pallas_src>

<mosaic_0001>
module attributes {stable_mosaic.version = 11 : i64} {
  func.func @anet_kernel(%arg0: memref<8x4xf32, #tpu.memory_space<vmem>>, %arg1: memref<4x128xf32, #tpu.memory_space<vmem>>, %arg2: memref<1x128xf32, #tpu.memory_space<vmem>>, %arg3: memref<128x2xf32, #tpu.memory_space<vmem>>, %arg4: memref<1x2xf32, #tpu.memory_space<vmem>>, %arg5: memref<8x2xf32, #tpu.memory_space<vmem>>) attributes {dimension_semantics = [], scalar_prefetch = 0 : i64, scratch_operands = 0 : i64, tpu.core_type = #tpu.core_type<tc>} {
    %c0 = arith.constant 0 : index
    %c0_0 = arith.constant 0 : index
    %0 = vector.load %arg0[%c0, %c0_0] : memref<8x4xf32, #tpu.memory_space<vmem>>, vector<8x4xf32>
    %c0_1 = arith.constant 0 : index
    %c0_2 = arith.constant 0 : index
    %1 = vector.load %arg1[%c0_1, %c0_2] : memref<4x128xf32, #tpu.memory_space<vmem>>, vector<4x128xf32>
    %cst = arith.constant dense<0.000000e+00> : vector<8x128xf32>
    %2 = tpu.matmul %0, %1, %cst {dimension_numbers = #tpu.dot_dimension_numbers<[1], [0], [0], [1], [0, 0, 1, 1], [], []>} : vector<8x4xf32>, vector<4x128xf32>, vector<8x128xf32> -> vector<8x128xf32>
    %c0_3 = arith.constant 0 : index
    %c0_4 = arith.constant 0 : index
    %3 = vector.load %arg2[%c0_3, %c0_4] : memref<1x128xf32, #tpu.memory_space<vmem>>, vector<1x128xf32>
    %4 = vector.broadcast %3 : vector<1x128xf32> to vector<8x128xf32>
    %5 = arith.addf %2, %4 : vector<8x128xf32>
    %cst_5 = arith.constant 0.000000e+00 : f32
    %6 = vector.broadcast %cst_5 : f32 to vector<8x128xf32>
    %7 = arith.maximumf %5, %6 : vector<8x128xf32>
    %c0_6 = arith.constant 0 : index
    %c0_7 = arith.constant 0 : index
    %8 = vector.load %arg3[%c0_6, %c0_7] : memref<128x2xf32, #tpu.memory_space<vmem>>, vector<128x2xf32>
    %cst_8 = arith.constant dense<0.000000e+00> : vector<8x2xf32>
    %9 = tpu.matmul %7, %8, %cst_8 {dimension_numbers = #tpu.dot_dimension_numbers<[1], [0], [0], [1], [0, 0, 1, 1], [], []>} : vector<8x128xf32>, vector<128x2xf32>, vector<8x2xf32> -> vector<8x2xf32>
    %c0_9 = arith.constant 0 : index
    %c0_10 = arith.constant 0 : index
    %10 = vector.load %arg4[%c0_9, %c0_10] : memref<1x2xf32, #tpu.memory_space<vmem>>, vector<1x2xf32>
    %11 = vector.broadcast %10 : vector<1x2xf32> to vector<8x2xf32>
    %12 = arith.addf %9, %11 : vector<8x2xf32>
    %13 = math.tanh %12 : vector<8x2xf32>
    %cst_11 = arith.constant 2.000000e+00 : f32
    %14 = vector.broadcast %cst_11 : f32 to vector<8x2xf32>
    %15 = arith.mulf %13, %14 : vector<8x2xf32>
    %c0_12 = arith.constant 0 : index
    %c0_13 = arith.constant 0 : index
    %16 = vector.load %arg5[%c0_12, %c0_13] : memref<8x2xf32, #tpu.memory_space<vmem>>, vector<8x2xf32>
    tpu.vector_store %arg5[%c0_12, %c0_13], %15 {strides = array<i32>} : memref<8x2xf32, #tpu.memory_space<vmem>>, vector<8x2xf32>,
    return
  }
}

</mosaic_0001>

<llo_original>
// kernel: anet_forward.1
$region0: #{anet_forward.1}
  #allocation0 [shape = 'u32[]', space=smem, size = 0x4, offset = 0x4, fixed_abs, tag = 'smem constant byte address 0x4 - core index']
  #allocation1 [shape = 'u32[144,128]{1,0:T(1,128)}', space=vmem, size = 0x12000, scoped, tag = 'internal scratch']
  %s0 = inlined_call_operand.vmem [shape: f32[8,4], index: 0, kind: input, shape index: {}]
  %s1 = inlined_call_operand.vmem [shape: f32[4,128], index: 1, kind: input, shape index: {}]
  %s2 = inlined_call_operand.vmem [shape: f32[1,128], index: 2, kind: input, shape index: {}]
  %s3 = inlined_call_operand.vmem [shape: f32[128,2], index: 3, kind: input, shape index: {}]
  %s4 = inlined_call_operand.vmem [shape: f32[1,2], index: 4, kind: input, shape index: {}]
  %s5 = inlined_call_operand.vmem [shape: f32[8,2], index: 5, kind: output, shape index: {}]
  %s6 = sld [smem:[#allocation0]]
  $region30: #{anet_forward.1} parent=0
    _
  %s8 = ssub.s32 1, %s6
  %s9 = scalar_select 0, %s8, %s6
  // Predicated region
  $region2: #{anet_forward.1} parent=0 // pred_check
    _
  $region3: #{anet_forward.1} parent=0 // pred_check_branch
    %11 = sbr.rel (0) target = $region5
  $region4: #{anet_forward.1} parent=0 // pred_region
    _
  $region5: #{anet_forward.1} parent=0 // pred_fallthru
    _
  // Predicated region
  $region6: #{anet_forward.1} parent=0 // pred_check
    _
  $region7: #{anet_forward.1} parent=0 // pred_check_branch
    %13 = sbr.rel (0) target = $region9
  $region8: #{anet_forward.1} parent=0 // pred_region
    _
  $region9: #{anet_forward.1} parent=0 // pred_fallthru
    _
  // Predicated region
  $region10: #{anet_forward.1} parent=0 // pred_check
    _
  $region11: #{anet_forward.1} parent=0 // pred_check_branch
    %15 = sbr.rel (0) target = $region13
  $region12: #{anet_forward.1} parent=0 // pred_region
    _
  $region13: #{anet_forward.1} parent=0 // pred_fallthru
    _
  // Predicated region
  $region14: #{anet_forward.1} parent=0 // pred_check
    _
  $region15: #{anet_forward.1} parent=0 // pred_check_branch
    %17 = sbr.rel (0) target = $region17
  $region16: #{anet_forward.1} parent=0 // pred_region
    _
  $region17: #{anet_forward.1} parent=0 // pred_fallthru
    _
  // Predicated region
  $region18: #{anet_forward.1} parent=0 // pred_check
    _
  $region19: #{anet_forward.1} parent=0 // pred_check_branch
    %19 = sbr.rel (0) target = $region21
  $region20: #{anet_forward.1} parent=0 // pred_region
    _
  $region21: #{anet_forward.1} parent=0 // pred_fallthru
    _
  %v20 = vld [vmem:[%s0] sm:$0xff]
  %v21 = vld [vmem:[%s1] sm:$0xf]
  %v22 = vld [vmem:[%s2] sm:$0x1]
  %v24 = vlaneseq
  %v25 = vshrl.u32 %v24, 7
  %v26 = vsub.s32 0, %v25
  %v27 = vrot.slane %v22, %v26
  %vm29 = vcmask 31744
  %v31 = vsel %vm29, %v20, 0
  %vm33 = vcmask 1043456
  %v35 = vsel %vm33, %v21, 0
  %37 = vmatprep.subr.mxu0 0.0
  %38 = vmatpush1.msra.mxu0 0.0
  %39 = vmatprep.subr.mxu0 0.0
  %40 = vmatpush1.msra.mxu0 0.0
  %41 = vmatprep.subr.mxu0 0.0
  %42 = vmatpush1.msra.mxu0 0.0
  %43 = vmatprep.subr.mxu0 0.0
  %44 = vmatpush1.msra.mxu0 0.0
  %45 = vmatprep.subr.mxu0 0.0
  %46 = vmatpush1.msra.mxu0 0.0
  %47 = vmatprep.subr.mxu0 0.0
  %48 = vmatpush1.msra.mxu0 0.0
  %49 = vmatprep.subr.mxu0 0.0
  %50 = vmatpush1.msra.mxu0 0.0
  %51 = vmatprep.subr.mxu0 0.0
  %52 = vmatpush1.msra.mxu0 0.0
  %53 = vmatprep.subr.mxu0 0.0
  %54 = vmatpush1.msra.mxu0 0.0
  %55 = vmatprep.subr.mxu0 0.0
  %56 = vmatpush1.msra.mxu0 0.0
  %57 = vmatprep.subr.mxu0 0.0
  %58 = vmatpush1.msra.mxu0 0.0
  %59 = vmatprep.subr.mxu0 0.0
  %60 = vmatpush1.msra.mxu0 0.0
  %61 = vmatprep.subr.mxu0 0.0
  %62 = vmatpush1.msra.mxu0 0.0
  %63 = vmatprep.subr.mxu0 0.0
  %64 = vmatpush1.msra.mxu0 0.0
  %65 = vmatprep.subr.mxu0 0.0
  %66 = vmatpush1.msra.mxu0 0.0
  %67 = vmatprep.subr.mxu0 0.0
  %68 = vmatpush1.msra.mxu0 %v35
  %69 = vmatprep.subr.mxu0 0.0
  %70 = vmatpush2.msra.mxu0 0.0
  %71 = vmatprep.subr.mxu0 0.0
  %72 = vmatpush2.msra.mxu0 0.0
  %73 = vmatprep.subr.mxu0 0.0
  %74 = vmatpush2.msra.mxu0 0.0
  %75 = vmatprep.subr.mxu0 0.0
  %76 = vmatpush2.msra.mxu0 0.0
  %77 = vmatprep.subr.mxu0 0.0
  %78 = vmatpush2.msra.mxu0 0.0
  %79 = vmatprep.subr.mxu0 0.0
  %80 = vmatpush2.msra.mxu0 0.0
  %81 = vmatprep.subr.mxu0 0.0
  %82 = vmatpush2.msra.mxu0 0.0
  %83 = vmatprep.subr.mxu0 0.0
  %84 = vmatpush2.msra.mxu0 0.0
  %85 = vmatprep.subr.mxu0 0.0
  %86 = vmatpush2.msra.mxu0 0.0
  %87 = vmatprep.subr.mxu0 0.0
  %88 = vmatpush2.msra.mxu0 0.0
  %89 = vmatprep.subr.mxu0 0.0
  %90 = vmatpush2.msra.mxu0 0.0
  %91 = vmatprep.subr.mxu0 0.0
  %92 = vmatpush2.msra.mxu0 0.0
  %93 = vmatprep.subr.mxu0 0.0
  %94 = vmatpush2.msra.mxu0 0.0
  %95 = vmatprep.subr.mxu0 0.0
  %96 = vmatpush2.msra.mxu0 0.0
  %97 = vmatprep.subr.mxu0 0.0
  %98 = vmatpush2.msra.mxu0 0.0
  %99 = vmatprep.subr.mxu0 0.0
  %100 = vmatpush2.msra.mxu0 0.0
  %101 = vmatprep.mubr.f32.mxu0 0.0
  %102 = vmatmul.mubr.f32.gmra.mxu0 %v31
  %v103 = vpop.f32.mrf.mxu0
  %v104 = vadd.f32 %v27, %v103
  %v105 = vpop.f32.mrf.mxu0
  %106 = vdwg.mxu0
  %v107 = vmax.f32 %v104, 0.0
  %v108 = vld [vmem:[%s3] sm:$0xff]
  %v109 = vld [vmem:[%s3 + $0x8] sm:$0xff]
  %v110 = vld [vmem:[%s3 + $0x10] sm:$0xff]
  %v111 = vld [vmem:[%s3 + $0x18] sm:$0xff]
  %v112 = vld [vmem:[%s3 + $0x20] sm:$0xff]
  %v113 = vld [vmem:[%s3 + $0x28] sm:$0xff]
  %v114 = vld [vmem:[%s3 + $0x30] sm:$0xff]
  %v115 = vld [vmem:[%s3 + $0x38] sm:$0xff]
  %v116 = vld [vmem:[%s3 + $0x40] sm:$0xff]
  %v117 = vld [vmem:[%s3 + $0x48] sm:$0xff]
  %v118 = vld [vmem:[%s3 + $0x50] sm:$0xff]
  %v119 = vld [vmem:[%s3 + $0x58] sm:$0xff]
  %v120 = vld [vmem:[%s3 + $0x60] sm:$0xff]
  %v121 = vld [vmem:[%s3 + $0x68] sm:$0xff]
  %v122 = vld [vmem:[%s3 + $0x70] sm:$0xff]
  %v123 = vld [vmem:[%s3 + $0x78] sm:$0xff]
  %v124 = vld [vmem:[%s4] sm:$0x1]
  %v126 = vlaneseq
  %v127 = vshrl.u32 %v126, 7
  %v128 = vsub.s32 0, %v127
  %v129 = vrot.slane %v124, %v128
  %131 = vmatprep.subr.mxu0 0.0
  %132 = vmatpush1.msra.mxu0 %v123
  %133 = vmatprep.subr.mxu0 0.0
  %134 = vmatpush1.msra.mxu0 %v122
  %135 = vmatprep.subr.mxu0 0.0
  %136 = vmatpush1.msra.mxu0 %v121
  %137 = vmatprep.subr.mxu0 0.0
  %138 = vmatpush1.msra.mxu0 %v120
  %139 = vmatprep.subr.mxu0 0.0
  %140 = vmatpush1.msra.mxu0 %v119
  %141 = vmatprep.subr.mxu0 0.0
  %142 = vmatpush1.msra.mxu0 %v118
  %143 = vmatprep.subr.mxu0 0.0
  %144 = vmatpush1.msra.mxu0 %v117
  %145 = vmatprep.subr.mxu0 0.0
  %146 = vmatpush1.msra.mxu0 %v116
  %147 = vmatprep.subr.mxu0 0.0
  %148 = vmatpush1.msra.mxu0 %v115
  %149 = vmatprep.subr.mxu0 0.0
  %150 = vmatpush1.msra.mxu0 %v114
  %151 = vmatprep.subr.mxu0 0.0
  %152 = vmatpush1.msra.mxu0 %v113
  %153 = vmatprep.subr.mxu0 0.0
  %154 = vmatpush1.msra.mxu0 %v112
  %155 = vmatprep.subr.mxu0 0.0
  %156 = vmatpush1.msra.mxu0 %v111
  %157 = vmatprep.subr.mxu0 0.0
  %158 = vmatpush1.msra.mxu0 %v110
  %159 = vmatprep.subr.mxu0 0.0
  %160 = vmatpush1.msra.mxu0 %v109
  %161 = vmatprep.subr.mxu0 0.0
  %162 = vmatpush1.msra.mxu0 %v108
  %163 = vmatprep.subr.mxu0 0.0
  %164 = vmatpush2.msra.mxu0 0.0
  %165 = vmatprep.subr.mxu0 0.0
  %166 = vmatpush2.msra.mxu0 0.0
  %167 = vmatprep.subr.mxu0 0.0
  %168 = vmatpush2.msra.mxu0 0.0
  %169 = vmatprep.subr.mxu0 0.0
  %170 = vmatpush2.msra.mxu0 0.0
  %171 = vmatprep.subr.mxu0 0.0
  %172 = vmatpush2.msra.mxu0 0.0
  %173 = vmatprep.subr.mxu0 0.0
  %174 = vmatpush2.msra.mxu0 0.0
  %175 = vmatprep.subr.mxu0 0.0
  %176 = vmatpush2.msra.mxu0 0.0
  %177 = vmatprep.subr.mxu0 0.0
  %178 = vmatpush2.msra.mxu0 0.0
  %179 = vmatprep.subr.mxu0 0.0
  %180 = vmatpush2.msra.mxu0 0.0
  %181 = vmatprep.subr.mxu0 0.0
  %182 = vmatpush2.msra.mxu0 0.0
  %183 = vmatprep.subr.mxu0 0.0
  %184 = vmatpush2.msra.mxu0 0.0
  %185 = vmatprep.subr.mxu0 0.0
  %186 = vmatpush2.msra.mxu0 0.0
  %187 = vmatprep.subr.mxu0 0.0
  %188 = vmatpush2.msra.mxu0 0.0
  %189 = vmatprep.subr.mxu0 0.0
  %190 = vmatpush2.msra.mxu0 0.0
  %191 = vmatprep.subr.mxu0 0.0
  %192 = vmatpush2.msra.mxu0 0.0
  %193 = vmatprep.subr.mxu0 0.0
  %194 = vmatpush2.msra.mxu0 0.0
  %195 = vmatprep.mubr.f32.mxu0 0.0
  %196 = vmatmul.mubr.f32.gmra.mxu0 %v107
  %v197 = vpop.f32.mrf.mxu0
  %v198 = vadd.f32 %v129, %v197
  %v199 = vpop.f32.mrf.mxu0
  %200 = vdwg.mxu0
  %v201 = vtanh.pop %v198
  %v202 = vmul.f32 %v201, 2.0
  %vm203 = vcmask 15360
  %204 = vst.msk [vmem:[%s5] sm:$0xff] %vm203, %v202
  // Predicated region
  $region22: #{anet_forward.1} parent=0 // pred_check
    _
  $region23: #{anet_forward.1} parent=0 // pred_check_branch
    %206 = sbr.rel (0) target = $region25
  $region24: #{anet_forward.1} parent=0 // pred_region
    _
  $region25: #{anet_forward.1} parent=0 // pred_fallthru
    _
  // Predicated region
  $region26: #{anet_forward.1} parent=0 // pred_check
    _
  $region27: #{anet_forward.1} parent=0 // pred_check_branch
    %208 = sbr.rel (0) target = $region29
  $region28: #{anet_forward.1} parent=0 // pred_region
    _
  $region29: #{anet_forward.1} parent=0 // pred_fallthru
    _

</llo_original>
